<compile_context>
chip_gen: v6e
topology: v6e:2x2x1
jax: 0.10.0
libtpu: 0.0.40
codegen_flags: <defaults>
</compile_context>

<pallas_src>
import jax
import jax.numpy as jnp
from jax.experimental import pallas as pl
from jax.experimental.pallas import tpu as pltpu

N_PARAM = 102     # 3DMM parameter length expected by reconstruct_vertex
LANE = 128        # 102 padded up to one full lane width (no masked partial vregs)
K_PACK = 64       # packed basis rows: [0:12]=0, [12:52]=w_shp, [52:62]=w_exp, [62]=u, [63]=0


# --------------------------------------------------------------------------- #
# Kernels
# --------------------------------------------------------------------------- #
def _head_kernel(x_ref, wh_ref, bh_ref, std_ref, mean_ref, coeff_ref, pool_ref):
    """Surrogate backbone head + whitening + coefficient packing (runs once)."""
    x = x_ref[...]                                   # (B, C, H*W) f32
    pooled = jnp.mean(x, axis=-1)                    # (B, C) global average pool
    pool_ref[...] = pooled

    attr = jnp.dot(pooled, wh_ref[...],
                   preferred_element_type=jnp.float32) + bh_ref[...]      # (B, 128)
    param = attr * std_ref[...] + mean_ref[...]      # whitening            (B, 128)

    # p_to_Rs: scale s from rows 0 / 1 of the 3x4 pose block (param[:, :12]).
    r0 = param[:, 0:3]
    r1 = param[:, 4:7]
    s = 0.5 * (jnp.sqrt(jnp.sum(r0 * r0, axis=-1, keepdims=True)) +
               jnp.sqrt(jnp.sum(r1 * r1, axis=-1, keepdims=True)))        # (B, 1)

    # Coefficient row aligned with the packed-basis rows:
    #   lanes 12..61 -> whitened alpha_shp / alpha_exp, lane 62 -> 1 (u row),
    #   everything else 0.  Pre-scaled by s so the streaming kernel is a pure
    #   matmul per tile (s * (u + W_shp a + W_exp a) == (s*coeff) @ W_pack).
    p64 = param[:, :K_PACK]                          # (B, 64)
    lane = jax.lax.broadcasted_iota(jnp.int32, p64.shape, 1)
    coeff = jnp.where((lane >= 12) & (lane < 62), p64,
                      jnp.where(lane == 62, 1.0, 0.0))
    coeff_ref[...] = s * coeff                       # (B, 64) f32


def _vertex_stream_kernel(coeff_ref, wpack_ref, vert_ref):
    """One output tile: (B, 64) @ (64, TN) bf16 on the MXU, f32 accumulate."""
    vert_ref[...] = jnp.dot(coeff_ref[...].astype(jnp.bfloat16),
                            wpack_ref[...],
                            preferred_element_type=jnp.float32)


# --------------------------------------------------------------------------- #
# Wrapper
# --------------------------------------------------------------------------- #
def synergy_forward(x_nchw, kparams):
    """SynergyNet forward -> (dense vertices (B, 3, N), pool feature (B, C))."""
    B, C, H, W = x_nchw.shape
    x3 = x_nchw.reshape(B, C, H * W).astype(jnp.float32)

    n_vert = kparams["n_vert"]
    n_pad = kparams["n_pad"]
    tn = kparams["tn"]
    l_pad = 3 * n_pad
    assert l_pad % tn == 0

    vmem = pl.BlockSpec(memory_space=pltpu.MemorySpace.VMEM)

    # ---- small head: runs once, everything resident in VMEM (hoisted out of
    #      the streaming loop so the inner loop never re-reads the image).
    coeff, pool_x = pl.pallas_call(
        _head_kernel,
        out_shape=(
            jax.ShapeDtypeStruct((B, K_PACK), jnp.float32),    # s-scaled coefficients
            jax.ShapeDtypeStruct((B, C), jnp.float32),         # pool_x backbone feature
        ),
        in_specs=[vmem] * 5,
        out_specs=(vmem, vmem),
    )(x3, kparams["wh"], kparams["bh"], kparams["std"], kparams["mean"])

    # ---- streaming vertex reconstruction: 1-D grid over the coordinate-major,
    #      padded vertex axis; the (64, l_pad) bf16 basis is the HBM stream and
    #      is double-buffered by the BlockSpec pipeline (the coeff block index
    #      is constant, so it is DMA'd once and stays resident).
    vert_flat = pl.pallas_call(
        _vertex_stream_kernel,
        out_shape=jax.ShapeDtypeStruct((B, l_pad), jnp.float32),
        grid_spec=pltpu.PrefetchScalarGridSpec(
            num_scalar_prefetch=0,
            grid=(l_pad // tn,),
            in_specs=[
                pl.BlockSpec((B, K_PACK), lambda j: (0, 0)),    # resident
                pl.BlockSpec((K_PACK, tn), lambda j: (0, j)),   # streamed weights
            ],
            out_specs=pl.BlockSpec((B, tn), lambda j: (0, j)),  # lane-dense stores
        ),
        compiler_params=pltpu.CompilerParams(
            dimension_semantics=("parallel",),     # v7x: both TCs stream half of L
            vmem_limit_bytes=32 * 1024 * 1024,     # explicit, fits v5e/v6e/v7x
        ),
    )(coeff, kparams["wpack"])

    # Output is already coordinate-major: free reshape + slice off the padding.
    vertex = vert_flat.reshape(B, 3, n_pad)[:, :, :n_vert]
    return vertex, pool_x


# --------------------------------------------------------------------------- #
# Parameter construction
# --------------------------------------------------------------------------- #
def init_params(key, C, n_vert):
    """Deterministic synthetic parameters in the PyTorch layout (no checkpoint)."""
    L = 3 * n_vert
    ks = jax.random.split(key, 7)
    return {
        "wh":    0.05 * jax.random.normal(ks[0], (C, N_PARAM), jnp.float32),
        "bh":    0.01 * jax.random.normal(ks[1], (1, N_PARAM), jnp.float32),
        "std":   0.5 + 0.1 * jax.random.uniform(ks[2], (1, N_PARAM), jnp.float32),
        "mean":  0.1 * jax.random.normal(ks[3], (1, N_PARAM), jnp.float32),
        "u":     jax.random.normal(ks[4], (1, L), jnp.float32),
        # stored pre-transposed (40, L) / (10, L): row k = basis k over vertices
        "wshpT": 0.1 * jax.random.normal(ks[5], (40, L), jnp.float32),
        "wexpT": 0.1 * jax.random.normal(ks[6], (10, L), jnp.float32),
    }


def prepare_kernel_params(raw, tn):
    """Pack / pad / permute raw parameters into the kernel layout (one-time).

    - head params padded from 102 to 128 lanes (full-vreg, unmasked stores)
    - basis packed into a single (64, 3*n_pad) bf16 matrix (halves HBM traffic)
      whose columns are permuted from vertex-interleaved (n*3 + c) order to
      coordinate-major (c*n_pad + n) order, so the kernel output is lane-dense
      (B, 3, N) with no wrapper transpose.  Padding columns are zero.
    """
    assert tn % 128 == 0, "tile width must be a multiple of 128 lanes"
    C = raw["wh"].shape[0]
    L = raw["u"].shape[-1]
    n_vert = L // 3
    n_pad = ((n_vert + tn - 1) // tn) * tn

    wh = jnp.zeros((C, LANE), jnp.float32).at[:, :N_PARAM].set(raw["wh"])
    bh = jnp.zeros((1, LANE), jnp.float32).at[:, :N_PARAM].set(raw["bh"])
    std = jnp.ones((1, LANE), jnp.float32).at[:, :N_PARAM].set(raw["std"])
    mean = jnp.zeros((1, LANE), jnp.float32).at[:, :N_PARAM].set(raw["mean"])

    wpack = jnp.zeros((K_PACK, L), jnp.float32)
    wpack = wpack.at[12:52].set(raw["wshpT"])
    wpack = wpack.at[52:62].set(raw["wexpT"])
    wpack = wpack.at[62].set(raw["u"][0])
    # column permutation: flat (n*3 + c)  ->  coordinate-major (c*n_pad + n)
    wpack = wpack.reshape(K_PACK, n_vert, 3).transpose(0, 2, 1)      # (64, 3, N)
    wpack = jnp.pad(wpack, ((0, 0), (0, 0), (0, n_pad - n_vert)))    # zero vertex pad
    wpack = wpack.reshape(K_PACK, 3 * n_pad).astype(jnp.bfloat16)

    return {"wh": wh, "bh": bh, "std": std, "mean": mean, "wpack": wpack,
            "n_vert": n_vert, "n_pad": n_pad, "tn": tn}


# --------------------------------------------------------------------------- #
# Pure-JAX reference (PyTorch math order, same bf16 rounding as the kernel)
# --------------------------------------------------------------------------- #
def _reference_forward(x_nchw, raw):
    B, C, H, W = x_nchw.shape
    pooled = x_nchw.reshape(B, C, H * W).mean(-1)
    attr = pooled @ raw["wh"] + raw["bh"][0]
    param = attr * raw["std"][0] + raw["mean"][0]
    s = 0.5 * (jnp.linalg.norm(param[:, 0:3], axis=1) +
               jnp.linalg.norm(param[:, 4:7], axis=1))
    a_shp = param[:, 12:52]
    a_exp = param[:, 52:62]
    coeff = jnp.concatenate(
        [a_shp, a_exp, jnp.ones((B, 1), jnp.float32)], axis=-1)        # (B, 51)
    coeff = (s[:, None] * coeff).astype(jnp.bfloat16)
    w = jnp.concatenate(
        [raw["wshpT"], raw["wexpT"], raw["u"]], axis=0).astype(jnp.bfloat16)  # (51, L)
    base = jnp.dot(coeff, w, preferred_element_type=jnp.float32)       # (B, L)
    n = base.shape[-1] // 3
    # .view(-1, N, 3).transpose(1, 2)  ->  (B, 3, N)
    return base.reshape(B, n, 3).transpose(0, 2, 1), pooled


if __name__ == "__main__":
    key = jax.random.PRNGKey(0)
    k_x, k_p = jax.random.split(key)

    B, C, H, W = 2, 32, 16, 16         # small NCHW input
    n_vert = 128                       # small stand-in for the 53215 dense vertices
    tn = 256                           # lane tile; use 4096-8192 at real model size

    x = jax.random.normal(k_x, (B, C, H, W), jnp.float32)
    raw = init_params(k_p, C, n_vert)
    kparams = prepare_kernel_params(raw, tn)

    vertex, pool_x = synergy_forward(x, kparams)
    vertex = jax.block_until_ready(vertex)
    pool_x = jax.block_until_ready(pool_x)

    assert vertex.shape == (B, 3, n_vert), vertex.shape
    assert pool_x.shape == (B, C), pool_x.shape

    ref_vertex, ref_pool = _reference_forward(x, raw)
    assert jnp.allclose(pool_x, ref_pool, atol=1e-4, rtol=1e-4), "pool mismatch"
    assert jnp.allclose(vertex, ref_vertex, atol=1e-2, rtol=1e-2), "vertex mismatch"

    print("KERNEL_OK")
</pallas_src>

<mosaic_0001>
module attributes {stable_mosaic.version = 11 : i64} {
  func.func @_head_kernel(%arg0: memref<2x32x256xf32, #tpu.memory_space<vmem>>, %arg1: memref<32x128xf32, #tpu.memory_space<vmem>>, %arg2: memref<1x128xf32, #tpu.memory_space<vmem>>, %arg3: memref<1x128xf32, #tpu.memory_space<vmem>>, %arg4: memref<1x128xf32, #tpu.memory_space<vmem>>, %arg5: memref<2x64xf32, #tpu.memory_space<vmem>>, %arg6: memref<2x32xf32, #tpu.memory_space<vmem>>) attributes {dimension_semantics = [], scalar_prefetch = 0 : i64, scratch_operands = 0 : i64, tpu.core_type = #tpu.core_type<tc>} {
    %c0 = arith.constant 0 : index
    %c0_0 = arith.constant 0 : index
    %c0_1 = arith.constant 0 : index
    %0 = vector.load %arg0[%c0, %c0_0, %c0_1] : memref<2x32x256xf32, #tpu.memory_space<vmem>>, vector<2x32x256xf32>
    %cst = arith.constant dense<0.000000e+00> : vector<2x32xf32>
    %1 = vector.multi_reduction <add>, %0, %cst [2] : vector<2x32x256xf32> to vector<2x32xf32>
    %cst_2 = arith.constant 2.560000e+02 : f32
    %2 = vector.broadcast %cst_2 : f32 to vector<2x32xf32>
    %3 = arith.divf %1, %2 : vector<2x32xf32>
    %c0_3 = arith.constant 0 : index
    %c0_4 = arith.constant 0 : index
    %4 = vector.load %arg6[%c0_3, %c0_4] : memref<2x32xf32, #tpu.memory_space<vmem>>, vector<2x32xf32>
    tpu.vector_store %arg6[%c0_3, %c0_4], %3 {strides = array<i32>} : memref<2x32xf32, #tpu.memory_space<vmem>>, vector<2x32xf32>,
    %c0_5 = arith.constant 0 : index
    %c0_6 = arith.constant 0 : index
    %5 = vector.load %arg1[%c0_5, %c0_6] : memref<32x128xf32, #tpu.memory_space<vmem>>, vector<32x128xf32>
    %cst_7 = arith.constant dense<0.000000e+00> : vector<2x128xf32>
    %6 = tpu.matmul %3, %5, %cst_7 {dimension_numbers = #tpu.dot_dimension_numbers<[1], [0], [0], [1], [0, 0, 1, 1], [], []>} : vector<2x32xf32>, vector<32x128xf32>, vector<2x128xf32> -> vector<2x128xf32>
    %c0_8 = arith.constant 0 : index
    %c0_9 = arith.constant 0 : index
    %7 = vector.load %arg2[%c0_8, %c0_9] : memref<1x128xf32, #tpu.memory_space<vmem>>, vector<1x128xf32>
    %8 = vector.broadcast %7 : vector<1x128xf32> to vector<2x128xf32>
    %9 = arith.addf %6, %8 : vector<2x128xf32>
    %c0_10 = arith.constant 0 : index
    %c0_11 = arith.constant 0 : index
    %10 = vector.load %arg3[%c0_10, %c0_11] : memref<1x128xf32, #tpu.memory_space<vmem>>, vector<1x128xf32>
    %11 = vector.broadcast %10 : vector<1x128xf32> to vector<2x128xf32>
    %12 = arith.mulf %9, %11 : vector<2x128xf32>
    %c0_12 = arith.constant 0 : index
    %c0_13 = arith.constant 0 : index
    %13 = vector.load %arg4[%c0_12, %c0_13] : memref<1x128xf32, #tpu.memory_space<vmem>>, vector<1x128xf32>
    %14 = vector.broadcast %13 : vector<1x128xf32> to vector<2x128xf32>
    %15 = arith.addf %12, %14 : vector<2x128xf32>
    %16 = vector.extract_strided_slice %15 {offsets = [0, 0], sizes = [2, 3], strides = [1, 1]} : vector<2x128xf32> to vector<2x3xf32>
    %17 = vector.extract_strided_slice %15 {offsets = [0, 4], sizes = [2, 3], strides = [1, 1]} : vector<2x128xf32> to vector<2x3xf32>
    %18 = arith.mulf %16, %16 : vector<2x3xf32>
    %cst_14 = arith.constant dense<0.000000e+00> : vector<2xf32>
    %19 = vector.multi_reduction <add>, %18, %cst_14 [1] : vector<2x3xf32> to vector<2xf32>
    %20 = vector.shape_cast %19 : vector<2xf32> to vector<2x1xf32>
    %21 = math.sqrt %20 : vector<2x1xf32>
    %22 = arith.mulf %17, %17 : vector<2x3xf32>
    %cst_15 = arith.constant dense<0.000000e+00> : vector<2xf32>
    %23 = vector.multi_reduction <add>, %22, %cst_15 [1] : vector<2x3xf32> to vector<2xf32>
    %24 = vector.shape_cast %23 : vector<2xf32> to vector<2x1xf32>
    %25 = math.sqrt %24 : vector<2x1xf32>
    %26 = arith.addf %21, %25 : vector<2x1xf32>
    %cst_16 = arith.constant 5.000000e-01 : f32
    %27 = vector.broadcast %cst_16 : f32 to vector<2x1xf32>
    %28 = arith.mulf %27, %26 : vector<2x1xf32>
    %29 = vector.extract_strided_slice %15 {offsets = [0, 0], sizes = [2, 64], strides = [1, 1]} : vector<2x128xf32> to vector<2x64xf32>
    %30 = tpu.iota {dimensions = array<i32: 1>} : vector<2x64xi32>
    %c12_i32 = arith.constant 12 : i32
    %31 = vector.broadcast %c12_i32 : i32 to vector<2x64xi32>
    %32 = arith.cmpi sge, %30, %31 : vector<2x64xi32>
    %c62_i32 = arith.constant 62 : i32
    %33 = vector.broadcast %c62_i32 : i32 to vector<2x64xi32>
    %34 = arith.cmpi slt, %30, %33 : vector<2x64xi32>
    %35 = arith.andi %32, %34 : vector<2x64xi1>
    %c62_i32_17 = arith.constant 62 : i32
    %36 = vector.broadcast %c62_i32_17 : i32 to vector<2x64xi32>
    %37 = arith.cmpi eq, %30, %36 : vector<2x64xi32>
    %cst_18 = arith.constant 1.000000e+00 : f32
    %cst_19 = arith.constant 0.000000e+00 : f32
    %38 = vector.broadcast %cst_18 : f32 to vector<2x64xf32>
    %39 = vector.broadcast %cst_19 : f32 to vector<2x64xf32>
    %40 = arith.select %37, %38, %39 : vector<2x64xi1>, vector<2x64xf32>
    %41 = arith.select %35, %29, %40 : vector<2x64xi1>, vector<2x64xf32>
    %42 = vector.broadcast %28 : vector<2x1xf32> to vector<2x64xf32>
    %43 = arith.mulf %42, %41 : vector<2x64xf32>
    %c0_20 = arith.constant 0 : index
    %c0_21 = arith.constant 0 : index
    %44 = vector.load %arg5[%c0_20, %c0_21] : memref<2x64xf32, #tpu.memory_space<vmem>>, vector<2x64xf32>
    tpu.vector_store %arg5[%c0_20, %c0_21], %43 {strides = array<i32>} : memref<2x64xf32, #tpu.memory_space<vmem>>, vector<2x64xf32>,
    return
  }
}

</mosaic_0001>

<llo_original>
// kernel: tpu_custom_call.1
$region0: #{tpu_custom_call.1}
  #allocation0 [shape = 'u32[]', space=smem, size = 0x4, offset = 0x4, fixed_abs, tag = 'smem constant byte address 0x4 - core index']
  #allocation1 [shape = 'u32[144,128]{1,0:T(1,128)}', space=vmem, size = 0x12000, scoped, tag = 'internal scratch']
  %s0 = inlined_call_operand.hbm [shape: f32[2,32,256], index: 0, kind: input, shape index: {}]
  %s1 = inlined_call_operand.hbm [shape: f32[32,128], index: 1, kind: input, shape index: {}]
  %s2 = inlined_call_operand.vmem [shape: f32[1,128], index: 2, kind: input, shape index: {}]
  %s3 = inlined_call_operand.vmem [shape: f32[1,128], index: 3, kind: input, shape index: {}]
  %s4 = inlined_call_operand.vmem [shape: f32[1,128], index: 4, kind: input, shape index: {}]
  %s5 = inlined_call_operand.hbm [shape: f32[2,64], index: 5, kind: output, shape index: {0}]
  %s6 = inlined_call_operand.hbm [shape: f32[2,32], index: 6, kind: output, shape index: {1}]
  %7 = xla_tuple %s5, %s6
  %s8 = sld [smem:[#allocation0]]
  $region46: #{tpu_custom_call.1} parent=0
    _
  %s10 = ssub.s32 1, %s8
  %s11 = scalar_select 0, %s10, %s8
  $region1: #{tpu_custom_call.1} parent=0
    #allocation2 [shape = 'u8[65536]{0}', space=vmem, size = 0x10000, scoped, tag = 'input window, operand 0, single buffered']
    #allocation3 [shape = 's32[1]{0}', space=sflag, size = 0x4, scoped, tag = 'scoped memory for tpu_custom_call.1']
    #allocation4 [shape = 's32[1]{0}', space=sflag, size = 0x4, scoped, tag = 'scoped memory for tpu_custom_call.1']
    #allocation5 [shape = 'u8[16384]{0}', space=vmem, size = 0x4000, scoped, tag = 'input window, operand 1, single buffered']
    #allocation6 [shape = 's32[1]{0}', space=sflag, size = 0x4, scoped, tag = 'scoped memory for tpu_custom_call.1']
    #allocation7 [shape = 'u8[1024]{0}', space=vmem, size = 0x400, scoped, tag = 'output window, operand 0, single buffered']
    #allocation8 [shape = 'u8[1024]{0}', space=vmem, size = 0x400, scoped, tag = 'output window, operand 1, single buffered']
    #allocation9 [shape = 's32[1]{0}', space=sflag, size = 0x4, scoped, tag = 'scoped memory for tpu_custom_call.1']
    %12 = vsyncpa [#allocation3], 0
    %13 = vsyncpa [#allocation6], 0
    %14 = vsyncpa [#allocation4], 0
    %15 = vsyncpa [#allocation9], 0
    // Predicated region
    $region2: #{tpu_custom_call.1} parent=1 // pred_check
      _
    $region3: #{tpu_custom_call.1} parent=1 // pred_check_branch
      %17 = sbr.rel (0) target = $region5
    $region4: #{tpu_custom_call.1} parent=1 // pred_region
      %s19 = ssub.s32 2048, 2048
      %20 = vsyncadd [#allocation3], %s19
      %s21 = sshll.u32 [#allocation2], 4
      %s22 = int_to_ptr.vmem [resolvable:$true] %s21
      %27 = dma.hbm_to_vmem [thread:$0]  %s0, 2048, %s22, [#allocation3], 256, 256, 16
    $region5: #{tpu_custom_call.1} parent=1 // pred_fallthru
      _
    // Predicated region
    $region6: #{tpu_custom_call.1} parent=1 // pred_check
      _
    $region7: #{tpu_custom_call.1} parent=1 // pred_check_branch
      %29 = sbr.rel (0) target = $region9
    $region8: #{tpu_custom_call.1} parent=1 // pred_region
      %s31 = ssub.s32 512, 512
      %32 = vsyncadd [#allocation6], %s31
      %s33 = sshll.u32 [#allocation5], 4
      %s34 = int_to_ptr.vmem [resolvable:$true] %s33
      %39 = dma.hbm_to_vmem [thread:$0]  %s1, 512, %s34, [#allocation6], 128, 128, 8
    $region9: #{tpu_custom_call.1} parent=1 // pred_fallthru
      _
    // Predicated region
    $region10: #{tpu_custom_call.1} parent=1 // pred_check
      _
    $region11: #{tpu_custom_call.1} parent=1 // pred_check_branch
      %41 = sbr.rel (0) target = $region13
    $region12: #{tpu_custom_call.1} parent=1 // pred_region
      _
    $region13: #{tpu_custom_call.1} parent=1 // pred_fallthru
      _
    // Predicated region
    $region14: #{tpu_custom_call.1} parent=1 // pred_check
      _
    $region15: #{tpu_custom_call.1} parent=1 // pred_check_branch
      %43 = sbr.rel (0) target = $region17
    $region16: #{tpu_custom_call.1} parent=1 // pred_region
      _
    $region17: #{tpu_custom_call.1} parent=1 // pred_fallthru
      _
    // Predicated region
    $region18: #{tpu_custom_call.1} parent=1 // pred_check
      _
    $region19: #{tpu_custom_call.1} parent=1 // pred_check_branch
      %45 = sbr.rel (0) target = $region21
    $region20: #{tpu_custom_call.1} parent=1 // pred_region
      _
    $region21: #{tpu_custom_call.1} parent=1 // pred_fallthru
      _
    // Predicated region
    $region22: #{tpu_custom_call.1} parent=1 // pred_check
      _
    $region23: #{tpu_custom_call.1} parent=1 // pred_check_branch
      %47 = sbr.rel (0) target = $region25
    $region24: #{tpu_custom_call.1} parent=1 // pred_region
      %48 = dma.done [#allocation3], 2048
    $region25: #{tpu_custom_call.1} parent=1 // pred_fallthru
      _
    // Predicated region
    $region26: #{tpu_custom_call.1} parent=1 // pred_check
      _
    $region27: #{tpu_custom_call.1} parent=1 // pred_check_branch
      %50 = sbr.rel (0) target = $region29
    $region28: #{tpu_custom_call.1} parent=1 // pred_region
      %51 = dma.done [#allocation6], 512
    $region29: #{tpu_custom_call.1} parent=1 // pred_fallthru
      _
    %v52 = vld [vmem:[#allocation2] sm:$0xff]
    %v53 = vld [vmem:[#allocation2 + $0x8] sm:$0xff]
    %v54 = vld [vmem:[#allocation2 + $0x10] sm:$0xff]
    %v55 = vld [vmem:[#allocation2 + $0x18] sm:$0xff]
    %v56 = vld [vmem:[#allocation2 + $0x20] sm:$0xff]
    %v57 = vld [vmem:[#allocation2 + $0x28] sm:$0xff]
    %v58 = vld [vmem:[#allocation2 + $0x30] sm:$0xff]
    %v59 = vld [vmem:[#allocation2 + $0x38] sm:$0xff]
    %v60 = vld [vmem:[#allocation2 + $0x40] sm:$0xff]
    %v61 = vld [vmem:[#allocation2 + $0x48] sm:$0xff]
    %v62 = vld [vmem:[#allocation2 + $0x50] sm:$0xff]
    %v63 = vld [vmem:[#allocation2 + $0x58] sm:$0xff]
    %v64 = vld [vmem:[#allocation2 + $0x60] sm:$0xff]
    %v65 = vld [vmem:[#allocation2 + $0x68] sm:$0xff]
    %v66 = vld [vmem:[#allocation2 + $0x70] sm:$0xff]
    %v67 = vld [vmem:[#allocation2 + $0x78] sm:$0xff]
    %v68 = vadd.f32 %v52, %v53
    %69 = vadd.xlane.f32.xlu0 %v68
    %v70 = vpop.xlane.xlu0 %69
    %v71 = vadd.f32 %v54, %v55
    %72 = vadd.xlane.f32.xlu0 %v71
    %v73 = vpop.xlane.xlu0 %72
    %v74 = vadd.f32 %v56, %v57
    %75 = vadd.xlane.f32.xlu0 %v74
    %v76 = vpop.xlane.xlu0 %75
    %v77 = vadd.f32 %v58, %v59
    %78 = vadd.xlane.f32.xlu0 %v77
    %v79 = vpop.xlane.xlu0 %78
    %v80 = vadd.f32 %v60, %v61
    %81 = vadd.xlane.f32.xlu0 %v80
    %v82 = vpop.xlane.xlu0 %81
    %v83 = vadd.f32 %v62, %v63
    %84 = vadd.xlane.f32.xlu0 %v83
    %v85 = vpop.xlane.xlu0 %84
    %v86 = vadd.f32 %v64, %v65
    %87 = vadd.xlane.f32.xlu0 %v86
    %v88 = vpop.xlane.xlu0 %87
    %v89 = vadd.f32 %v66, %v67
    %90 = vadd.xlane.f32.xlu0 %v89
    %v91 = vpop.xlane.xlu0 %90
    %v92 = vrcp.pop 256.0
    %v93 = vmul.f32 %v70, %v92
    %v94 = vmul.f32 %v73, %v92
    %v95 = vmul.f32 %v76, %v92
    %v96 = vmul.f32 %v79, %v92
    %v97 = vmul.f32 %v82, %v92
    %v98 = vmul.f32 %v85, %v92
    %v99 = vmul.f32 %v88, %v92
    %v100 = vmul.f32 %v91, %v92
    %v109 = vlaneseq
    %v110 = vand.u32 %v109, 127
    %v111 = vlaneseq
    %v112 = vshrl.u32 %v111, 7
    %v113 = vsub.s32 %v110, %v112
    %v114 = vrot.slane %v93, %v113
    %v115 = vadd.s32 %v110, 4294967288
    %v116 = vlaneseq
    %v117 = vshrl.u32 %v116, 7
    %v118 = vsub.s32 %v115, %v117
    %v119 = vrot.slane %v94, %v118
    %vm120 = vcmask 130112
    %v121 = vsel %vm120, %v119, %v114
    %v122 = vadd.s32 %v110, 4294967280
    %v123 = vlaneseq
    %v124 = vshrl.u32 %v123, 7
    %v125 = vsub.s32 %v122, %v124
    %v126 = vrot.slane %v95, %v125
    %vm127 = vcmask 195712
    %v128 = vsel %vm127, %v126, %v121
    %v129 = vadd.s32 %v110, 4294967272
    %v130 = vlaneseq
    %v131 = vshrl.u32 %v130, 7
    %v132 = vsub.s32 %v129, %v131
    %v133 = vrot.slane %v96, %v132
    %vm134 = vcmask 261312
    %v135 = vsel %vm134, %v133, %v128
    %v136 = vlaneseq
    %v137 = vshrl.u32 %v136, 7
    %v138 = vsub.s32 %v110, %v137
    %v139 = vrot.slane %v97, %v138
    %v140 = vlaneseq
    %v141 = vshrl.u32 %v140, 7
    %v142 = vsub.s32 %v115, %v141
    %v143 = vrot.slane %v98, %v142
    %v144 = vsel %vm120, %v143, %v139
    %v145 = vlaneseq
    %v146 = vshrl.u32 %v145, 7
    %v147 = vsub.s32 %v122, %v146
    %v148 = vrot.slane %v99, %v147
    %v149 = vsel %vm127, %v148, %v144
    %v150 = vlaneseq
    %v151 = vshrl.u32 %v150, 7
    %v152 = vsub.s32 %v129, %v151
    %v153 = vrot.slane %v100, %v152
    %v154 = vsel %vm134, %v153, %v149
    %vm155 = vcmask 1041409
    %v156 = vsel %vm155, %v154, %v135
    %vm158 = vcmask 254976
    %159 = vst.msk [vmem:[#allocation8] sm:$0x3] %vm158, %v156
    %v160 = vld [vmem:[#allocation5] sm:$0xff]
    %v161 = vld [vmem:[#allocation5 + $0x8] sm:$0xff]
    %v162 = vld [vmem:[#allocation5 + $0x10] sm:$0xff]
    %v163 = vld [vmem:[#allocation5 + $0x18] sm:$0xff]
    %v164 = vld [vmem:[%s2] sm:$0x1]
    %v166 = vlaneseq
    %v167 = vshrl.u32 %v166, 7
    %v168 = vsub.s32 0, %v167
    %v169 = vrot.slane %v164, %v168
    %vm171 = vcmask 261120
    %v172 = vsel %vm171, %v156, 0
    %174 = vmatprep.subr.mxu0 0.0
    %175 = vmatpush1.msra.mxu0 0.0
    %176 = vmatprep.subr.mxu0 0.0
    %177 = vmatpush1.msra.mxu0 0.0
    %178 = vmatprep.subr.mxu0 0.0
    %179 = vmatpush1.msra.mxu0 0.0
    %180 = vmatprep.subr.mxu0 0.0
    %181 = vmatpush1.msra.mxu0 0.0
    %182 = vmatprep.subr.mxu0 0.0
    %183 = vmatpush1.msra.mxu0 0.0
    %184 = vmatprep.subr.mxu0 0.0
    %185 = vmatpush1.msra.mxu0 0.0
    %186 = vmatprep.subr.mxu0 0.0
    %187 = vmatpush1.msra.mxu0 0.0
    %188 = vmatprep.subr.mxu0 0.0
    %189 = vmatpush1.msra.mxu0 0.0
    %190 = vmatprep.subr.mxu0 0.0
    %191 = vmatpush1.msra.mxu0 0.0
    %192 = vmatprep.subr.mxu0 0.0
    %193 = vmatpush1.msra.mxu0 0.0
    %194 = vmatprep.subr.mxu0 0.0
    %195 = vmatpush1.msra.mxu0 0.0
    %196 = vmatprep.subr.mxu0 0.0
    %197 = vmatpush1.msra.mxu0 0.0
    %198 = vmatprep.subr.mxu0 0.0
    %199 = vmatpush1.msra.mxu0 %v163
    %200 = vmatprep.subr.mxu0 0.0
    %201 = vmatpush1.msra.mxu0 %v162
    %202 = vmatprep.subr.mxu0 0.0
    %203 = vmatpush1.msra.mxu0 %v161
    %204 = vmatprep.subr.mxu0 0.0
    %205 = vmatpush1.msra.mxu0 %v160
    %206 = vmatprep.subr.mxu0 0.0
    %207 = vmatpush2.msra.mxu0 0.0
    %208 = vmatprep.subr.mxu0 0.0
    %209 = vmatpush2.msra.mxu0 0.0
    %210 = vmatprep.subr.mxu0 0.0
    %211 = vmatpush2.msra.mxu0 0.0
    %212 = vmatprep.subr.mxu0 0.0
    %213 = vmatpush2.msra.mxu0 0.0
    %214 = vmatprep.subr.mxu0 0.0
    %215 = vmatpush2.msra.mxu0 0.0
    %216 = vmatprep.subr.mxu0 0.0
    %217 = vmatpush2.msra.mxu0 0.0
    %218 = vmatprep.subr.mxu0 0.0
    %219 = vmatpush2.msra.mxu0 0.0
    %220 = vmatprep.subr.mxu0 0.0
    %221 = vmatpush2.msra.mxu0 0.0
    %222 = vmatprep.subr.mxu0 0.0
    %223 = vmatpush2.msra.mxu0 0.0
    %224 = vmatprep.subr.mxu0 0.0
    %225 = vmatpush2.msra.mxu0 0.0
    %226 = vmatprep.subr.mxu0 0.0
    %227 = vmatpush2.msra.mxu0 0.0
    %228 = vmatprep.subr.mxu0 0.0
    %229 = vmatpush2.msra.mxu0 0.0
    %230 = vmatprep.subr.mxu0 0.0
    %231 = vmatpush2.msra.mxu0 0.0
    %232 = vmatprep.subr.mxu0 0.0
    %233 = vmatpush2.msra.mxu0 0.0
    %234 = vmatprep.subr.mxu0 0.0
    %235 = vmatpush2.msra.mxu0 0.0
    %236 = vmatprep.subr.mxu0 0.0
    %237 = vmatpush2.msra.mxu0 0.0
    %238 = vmatprep.mubr.f32.mxu0 0.0
    %239 = vmatmul.mubr.f32.gmra.mxu0 %v172
    %v240 = vpop.f32.mrf.mxu0
    %v241 = vadd.f32 %v169, %v240
    %v242 = vpop.f32.mrf.mxu0
    %243 = vdwg.mxu0
    %v244 = vld [vmem:[%s3] sm:$0x1]
    %v246 = vlaneseq
    %v247 = vshrl.u32 %v246, 7
    %v248 = vsub.s32 0, %v247
    %v249 = vrot.slane %v244, %v248
    %v251 = vmul.f32 %v241, %v249
    %v252 = vld [vmem:[%s4] sm:$0x1]
    %v254 = vlaneseq
    %v255 = vshrl.u32 %v254, 7
    %v256 = vsub.s32 0, %v255
    %v257 = vrot.slane %v252, %v256
    %v259 = vadd.f32 %v251, %v257
    %v260 = vmul.f32 %v259, %v259
    %vm261 = vcmask 17408
    %v262 = vsel %vm261, %v260, 0.0
    %263 = vadd.xlane.f32.xlu0 %v262
    %v264 = vpop.xlane.xlu0 %263
    %v265 = vrsqrt.pop %v264
    %v266 = vmul.f32 %v264, %v265
    %vm267 = vcmp.eq.f32.partialorder %v264, inf
    %v268 = vsel %vm267, %v264, %v266
    %vm269 = vcmp.eq.f32.partialorder %v264, 0.0
    %v270 = vand.u32 %v264, 2147483648
    %v271 = vsel %vm269, %v270, %v268
    %273 = vrot.lane.b32.xlu0 %v260, 124
    %v274 = vpop.permute.xlu0 %273
    %v276 = vsel %vm261, %v274, 0.0
    %277 = vadd.xlane.f32.xlu0 %v276
    %v278 = vpop.xlane.xlu0 %277
    %v279 = vrsqrt.pop %v278
    %v280 = vmul.f32 %v278, %v279
    %vm281 = vcmp.eq.f32.partialorder %v278, inf
    %v282 = vsel %vm281, %v278, %v280
    %vm283 = vcmp.eq.f32.partialorder %v278, 0.0
    %v284 = vand.u32 %v278, 2147483648
    %v285 = vsel %vm283, %v284, %v282
    %v286 = vadd.f32 %v271, %v285
    %v287 = vmul.f32 %v286, 0.5
    %vm288 = vcmp.ge.s32.totalorder %v110, 12
    %vm289 = vcmp.lt.s32.totalorder %v110, 62
    %vm290 = vmand %vm288, %vm289
    %vm291 = vcmp.eq.s32.totalorder %v110, 62
    %v292 = vsel %vm291, 1.0, 0.0
    %v293 = vsel %vm290, %v259, %v292
    %v294 = vmul.f32 %v287, %v293
    %vm295 = vcmask 517120
    %296 = vst.msk [vmem:[#allocation7] sm:$0x3] %vm295, %v294
    // Predicated region
    $region30: #{tpu_custom_call.1} parent=1 // pred_check
      _
    $region31: #{tpu_custom_call.1} parent=1 // pred_check_branch
      %298 = sbr.rel (0) target = $region33
    $region32: #{tpu_custom_call.1} parent=1 // pred_region
      %s300 = ssub.s32 32, 32
      %301 = vsyncadd [#allocation4], %s300
      %s303 = sshll.u32 [#allocation7], 4
      %s304 = int_to_ptr.vmem [resolvable:$true] %s303
      %306 = dma.vmem_to_hbm [thread:$0]  %s304, 32, %s5, [#allocation4]
    $region33: #{tpu_custom_call.1} parent=1 // pred_fallthru
      _
    // Predicated region
    $region34: #{tpu_custom_call.1} parent=1 // pred_check
      _
    $region35: #{tpu_custom_call.1} parent=1 // pred_check_branch
      %308 = sbr.rel (0) target = $region37
    $region36: #{tpu_custom_call.1} parent=1 // pred_region
      %s310 = ssub.s32 32, 32
      %311 = vsyncadd [#allocation9], %s310
      %s313 = sshll.u32 [#allocation8], 4
      %s314 = int_to_ptr.vmem [resolvable:$true] %s313
      %316 = dma.vmem_to_hbm [thread:$0]  %s314, 32, %s6, [#allocation9]
    $region37: #{tpu_custom_call.1} parent=1 // pred_fallthru
      _
    // Predicated region
    $region38: #{tpu_custom_call.1} parent=1 // pred_check
      _
    $region39: #{tpu_custom_call.1} parent=1 // pred_check_branch
      %318 = sbr.rel (0) target = $region41
    $region40: #{tpu_custom_call.1} parent=1 // pred_region
      %319 = dma.done [#allocation4], 32
    $region41: #{tpu_custom_call.1} parent=1 // pred_fallthru
      _
    // Predicated region
    $region42: #{tpu_custom_call.1} parent=1 // pred_check
      _
    $region43: #{tpu_custom_call.1} parent=1 // pred_check_branch
      %321 = sbr.rel (0) target = $region45
    $region44: #{tpu_custom_call.1} parent=1 // pred_region
      %322 = dma.done [#allocation9], 32
    $region45: #{tpu_custom_call.1} parent=1 // pred_fallthru
      _
    %323 = vsyncpa [#allocation3], 1
    %324 = vsyncpa [#allocation6], 1
    %325 = vsyncpa [#allocation4], 1
    %326 = vsyncpa [#allocation9], 1

</llo_original>
